<compile_context>
chip_gen: v6e
topology: v6e:2x2x1
jax: 0.10.0
libtpu: 0.0.40
codegen_flags: <defaults>
</compile_context>

<pallas_src>
import jax
import jax.numpy as jnp
from jax.experimental import pallas as pl
from jax.experimental.pallas import tpu as pltpu

EPSILON = 1e-8

_LANE = 128                                # lane width of a vreg
_SUBLANE = 8                               # sublane granularity (f32)
_ALIGN = _LANE * _SUBLANE                  # flat-length alignment (whole 8x128 tiles)
_TARGET_BLOCK_BYTES = 4 * 1024 * 1024      # per-grid-step input block (in input dtype)
_VMEM_LIMIT_BYTES = 48 * 1024 * 1024       # fits v7x's 64 MiB physical VMEM


def _round_up(x: int, m: int) -> int:
    return (x + m - 1) // m * m


def _group_ones(n_feat: int) -> jax.Array:
    """128x128 block-diagonal ones matrix; blocks of size n_feat along the diag."""
    g = jnp.arange(_LANE, dtype=jnp.int32) // n_feat
    return (g[:, None] == g[None, :]).astype(jnp.float32)


def _choose_row_tile(n_rows: int, itemsize: int) -> int:
    """Rows (sublane axis) per block: ~4 MiB blocks, >=2 even steps when possible."""
    target = max(_SUBLANE,
                 (_TARGET_BLOCK_BYTES // (_LANE * itemsize)) // _SUBLANE * _SUBLANE)
    if n_rows <= _SUBLANE:
        return n_rows                       # single tiny block (== full extent)
    if n_rows <= target:
        # Small/medium input: split in two so v7x's second TensorCore gets work.
        return min(_round_up(pl.cdiv(n_rows, 2), _SUBLANE),
                   _round_up(n_rows, _SUBLANE))
    steps = pl.cdiv(n_rows, target)
    if steps % 2:                           # even step count -> balanced megacore split
        steps += 1
    return max(_SUBLANE, _round_up(pl.cdiv(n_rows, steps), _SUBLANE))


def _squash_kernel(x_ref, g_ref, o_ref):
    # x_ref block: (tile_rows, 128) lane-dense slab; each row holds whole capsules.
    x = x_ref[...].astype(jnp.float32)
    x2 = x * x
    # Segmented (per-capsule) sum of squares, broadcast back to every lane of the
    # capsule's group, in a single MXU matmul against the block-diagonal ones
    # matrix.  HIGHEST precision keeps the f32 sum exact (MXU has huge slack here).
    s2 = jnp.dot(x2, g_ref[...],
                 preferred_element_type=jnp.float32,
                 precision=jax.lax.Precision.HIGHEST)
    # scale = s2/(1+s2) * 1/sqrt(s2+eps); rsqrt + exact divide (EUP has slack).
    scale = (s2 * jax.lax.rsqrt(s2 + EPSILON)) / (1.0 + s2)
    o_ref[...] = (x * scale).astype(o_ref.dtype)


def squash_reference(s: jax.Array) -> jax.Array:
    """Pure-JAX reference mirroring the PyTorch forward exactly."""
    s2 = jnp.sum(jnp.square(s), axis=-1, keepdims=True)
    return s2 / (1.0 + s2) * (s / jnp.sqrt(s2 + EPSILON))


@jax.jit
def squash(s: jax.Array) -> jax.Array:
    """Pallas TPU squash.  s: [batch_size, n_capsules, n_features]."""
    batch, n_caps, n_feat = s.shape
    total = batch * n_caps * n_feat

    if n_feat == 0 or _LANE % n_feat != 0:
        # TODO(synk): lane-dense grouped layout needs n_features | 128; fall back
        # to plain JAX for other feature sizes.
        return squash_reference(s)

    # Zero-cost contiguous view -> lane-dense (rows, 128) slab.  Pad (copy) only
    # when the flat length is not already a whole number of 8x128 tiles; padded
    # elements are whole zero capsules, which squash to exactly zero.
    flat = s.reshape(-1)
    pad = (-total) % _ALIGN
    if pad:
        flat = jnp.pad(flat, (0, pad))
    n_rows = flat.shape[0] // _LANE
    x = flat.reshape(n_rows, _LANE)

    tile_rows = _choose_row_tile(n_rows, s.dtype.itemsize)
    grid = (pl.cdiv(n_rows, tile_rows),)
    g = _group_ones(n_feat)

    n_elems = n_rows * _LANE
    cost = pl.CostEstimate(
        flops=(2 * _LANE + 8) * n_elems,          # block-diag matmul + elementwise
        transcendentals=2 * n_elems,              # rsqrt + divide per element
        bytes_accessed=2 * n_elems * s.dtype.itemsize + g.size * 4,
    )

    y = pl.pallas_call(
        _squash_kernel,
        out_shape=jax.ShapeDtypeStruct((n_rows, _LANE), s.dtype),
        grid=grid,
        in_specs=[
            pl.BlockSpec((tile_rows, _LANE), lambda i: (i, 0)),
            pl.BlockSpec((_LANE, _LANE), lambda i: (0, 0)),   # constant block: DMA elided
        ],
        out_specs=pl.BlockSpec((tile_rows, _LANE), lambda i: (i, 0)),
        compiler_params=pltpu.CompilerParams(
            dimension_semantics=("parallel",),
            vmem_limit_bytes=_VMEM_LIMIT_BYTES,
        ),
        cost_estimate=cost,
    )(x, g)

    out_flat = y.reshape(-1)
    if pad:
        out_flat = out_flat[:total]
    return out_flat.reshape(batch, n_caps, n_feat)


if __name__ == "__main__":
    key = jax.random.PRNGKey(0)

    # [batch_size, n_capsules, n_features] -- small shapes consistent with the module.
    batch, n_caps, n_feat = 2, 8, 16
    s = jax.random.normal(key, (batch, n_caps, n_feat), dtype=jnp.float32)
    out = jax.block_until_ready(squash(s))
    ref = squash_reference(s)
    assert out.shape == ref.shape and out.dtype == ref.dtype
    assert jnp.allclose(out, ref, atol=1e-5, rtol=1e-4), "mismatch vs reference (case 1)"

    # A second, unaligned case exercises the padding / multi-step-grid path.
    s2 = jax.random.normal(jax.random.PRNGKey(1), (3, 50, 8), dtype=jnp.float32)
    out2 = jax.block_until_ready(squash(s2))
    ref2 = squash_reference(s2)
    assert out2.shape == ref2.shape
    assert jnp.allclose(out2, ref2, atol=1e-5, rtol=1e-4), "mismatch vs reference (case 2)"

    print("KERNEL_OK")
</pallas_src>

<mosaic_0001>
module attributes {stable_mosaic.version = 11 : i64} {
  func.func @_squash_kernel(%arg0: i32, %arg1: memref<8x128xf32, #tpu.memory_space<vmem>>, %arg2: memref<128x128xf32, #tpu.memory_space<vmem>>, %arg3: memref<8x128xf32, #tpu.memory_space<vmem>>) attributes {dimension_semantics = [#tpu.dimension_semantics<parallel>], iteration_bounds = array<i64: 1>, scalar_prefetch = 0 : i64, scratch_operands = 0 : i64, tpu.core_type = #tpu.core_type<tc>, window_params = [{transform_indices = @transform_0, window_bounds = array<i64: 8, 128>}, {pipeline_mode = #tpu.pipeline_mode<synchronous>, transform_indices = @transform_1, window_bounds = array<i64: 128, 128>}, {transform_indices = @transform_2, window_bounds = array<i64: 8, 128>}]} {
    %c0 = arith.constant 0 : index
    %c0_0 = arith.constant 0 : index
    %0 = vector.load %arg1[%c0, %c0_0] : memref<8x128xf32, #tpu.memory_space<vmem>>, vector<8x128xf32>
    %1 = arith.mulf %0, %0 : vector<8x128xf32>
    %c0_1 = arith.constant 0 : index
    %c0_2 = arith.constant 0 : index
    %2 = vector.load %arg2[%c0_1, %c0_2] : memref<128x128xf32, #tpu.memory_space<vmem>>, vector<128x128xf32>
    %cst = arith.constant dense<0.000000e+00> : vector<8x128xf32>
    %3 = tpu.matmul %1, %2, %cst {dimension_numbers = #tpu.dot_dimension_numbers<[1], [0], [0], [1], [0, 0, 1, 1], [], []>, precision = #tpu.contract_precision<fp32>} : vector<8x128xf32>, vector<128x128xf32>, vector<8x128xf32> -> vector<8x128xf32>
    %cst_3 = arith.constant 9.99999993E-9 : f32
    %4 = vector.broadcast %cst_3 : f32 to vector<8x128xf32>
    %5 = arith.addf %3, %4 : vector<8x128xf32>
    %6 = math.rsqrt %5 : vector<8x128xf32>
    %7 = arith.mulf %3, %6 : vector<8x128xf32>
    %cst_4 = arith.constant 1.000000e+00 : f32
    %8 = vector.broadcast %cst_4 : f32 to vector<8x128xf32>
    %9 = arith.addf %8, %3 : vector<8x128xf32>
    %10 = arith.divf %7, %9 : vector<8x128xf32>
    %11 = arith.mulf %0, %10 : vector<8x128xf32>
    %c0_5 = arith.constant 0 : index
    %c0_6 = arith.constant 0 : index
    %12 = vector.load %arg3[%c0_5, %c0_6] : memref<8x128xf32, #tpu.memory_space<vmem>>, vector<8x128xf32>
    tpu.vector_store %arg3[%c0_5, %c0_6], %11 {strides = array<i32>} : memref<8x128xf32, #tpu.memory_space<vmem>>, vector<8x128xf32>,
    return
  }
  func.func @transform_0(%arg0: i32) -> (i32, i32) {
    %c0_i32 = arith.constant 0 : i32
    %c0_i32_0 = arith.constant 0 : i32
    return %arg0, %c0_i32 : i32, i32
  }
  func.func @transform_1(%arg0: i32) -> (i32, i32) {
    %c0_i32 = arith.constant 0 : i32
    %c0_i32_0 = arith.constant 0 : i32
    %c0_i32_1 = arith.constant 0 : i32
    return %c0_i32, %c0_i32_0 : i32, i32
  }
  func.func @transform_2(%arg0: i32) -> (i32, i32) {
    %c0_i32 = arith.constant 0 : i32
    %c0_i32_0 = arith.constant 0 : i32
    return %arg0, %c0_i32 : i32, i32
  }
}

</mosaic_0001>

<llo_original>
// kernel: squash.1
$region0: #{squash.1}
  #allocation0 [shape = 'u32[]', space=smem, size = 0x4, offset = 0x4, fixed_abs, tag = 'smem constant byte address 0x4 - core index']
  #allocation1 [shape = 'u32[144,128]{1,0:T(1,128)}', space=vmem, size = 0x12000, scoped, tag = 'internal scratch']
  %s0 = inlined_call_operand.vmem [shape: f32[8,128], index: 0, kind: input, shape index: {}]
  %s1 = inlined_call_operand.vmem [shape: f32[128,128], index: 1, kind: input, shape index: {}]
  %s2 = inlined_call_operand.vmem [shape: f32[8,128], index: 2, kind: output, shape index: {}]
  %s3 = sld [smem:[#allocation0]]
  $region18: #{squash.1} parent=0
    _
  %s5 = ssub.s32 1, %s3
  %s6 = scalar_select 0, %s5, %s3
  // Predicated region
  $region2: #{squash.1} parent=0 // pred_check
    _
  $region3: #{squash.1} parent=0 // pred_check_branch
    %8 = sbr.rel (0) target = $region5
  $region4: #{squash.1} parent=0 // pred_region
    _
  $region5: #{squash.1} parent=0 // pred_fallthru
    _
  // Predicated region
  $region6: #{squash.1} parent=0 // pred_check
    _
  $region7: #{squash.1} parent=0 // pred_check_branch
    %10 = sbr.rel (0) target = $region9
  $region8: #{squash.1} parent=0 // pred_region
    _
  $region9: #{squash.1} parent=0 // pred_fallthru
    _
  %v11 = vld [vmem:[%s0] sm:$0xff]
  %v12 = vmul.f32 %v11, %v11
  %v13 = vld [vmem:[%s1] sm:$0xff]
  %v14 = vld [vmem:[%s1 + $0x8] sm:$0xff]
  %v15 = vld [vmem:[%s1 + $0x10] sm:$0xff]
  %v16 = vld [vmem:[%s1 + $0x18] sm:$0xff]
  %v17 = vld [vmem:[%s1 + $0x20] sm:$0xff]
  %v18 = vld [vmem:[%s1 + $0x28] sm:$0xff]
  %v19 = vld [vmem:[%s1 + $0x30] sm:$0xff]
  %v20 = vld [vmem:[%s1 + $0x38] sm:$0xff]
  %v21 = vld [vmem:[%s1 + $0x40] sm:$0xff]
  %v22 = vld [vmem:[%s1 + $0x48] sm:$0xff]
  %v23 = vld [vmem:[%s1 + $0x50] sm:$0xff]
  %v24 = vld [vmem:[%s1 + $0x58] sm:$0xff]
  %v25 = vld [vmem:[%s1 + $0x60] sm:$0xff]
  %v26 = vld [vmem:[%s1 + $0x68] sm:$0xff]
  %v27 = vld [vmem:[%s1 + $0x70] sm:$0xff]
  %v28 = vld [vmem:[%s1 + $0x78] sm:$0xff]
  %29 = vmatprep.subr.mxu0 0.0
  %v30 = vand.u32 %v28, 4294901760
  %31 = vmatpush1.msra.mxu0 %v30
  %32 = vmatprep.subr.mxu0 0.0
  %v33 = vand.u32 %v27, 4294901760
  %34 = vmatpush1.msra.mxu0 %v33
  %35 = vmatprep.subr.mxu0 0.0
  %v36 = vand.u32 %v26, 4294901760
  %37 = vmatpush1.msra.mxu0 %v36
  %38 = vmatprep.subr.mxu0 0.0
  %v39 = vand.u32 %v25, 4294901760
  %40 = vmatpush1.msra.mxu0 %v39
  %41 = vmatprep.subr.mxu0 0.0
  %v42 = vand.u32 %v24, 4294901760
  %43 = vmatpush1.msra.mxu0 %v42
  %44 = vmatprep.subr.mxu0 0.0
  %v45 = vand.u32 %v23, 4294901760
  %46 = vmatpush1.msra.mxu0 %v45
  %47 = vmatprep.subr.mxu0 0.0
  %v48 = vand.u32 %v22, 4294901760
  %49 = vmatpush1.msra.mxu0 %v48
  %50 = vmatprep.subr.mxu0 0.0
  %v51 = vand.u32 %v21, 4294901760
  %52 = vmatpush1.msra.mxu0 %v51
  %53 = vmatprep.subr.mxu0 0.0
  %v54 = vand.u32 %v20, 4294901760
  %55 = vmatpush1.msra.mxu0 %v54
  %56 = vmatprep.subr.mxu0 0.0
  %v57 = vand.u32 %v19, 4294901760
  %58 = vmatpush1.msra.mxu0 %v57
  %59 = vmatprep.subr.mxu0 0.0
  %v60 = vand.u32 %v18, 4294901760
  %61 = vmatpush1.msra.mxu0 %v60
  %62 = vmatprep.subr.mxu0 0.0
  %v63 = vand.u32 %v17, 4294901760
  %64 = vmatpush1.msra.mxu0 %v63
  %65 = vmatprep.subr.mxu0 0.0
  %v66 = vand.u32 %v16, 4294901760
  %67 = vmatpush1.msra.mxu0 %v66
  %68 = vmatprep.subr.mxu0 0.0
  %v69 = vand.u32 %v15, 4294901760
  %70 = vmatpush1.msra.mxu0 %v69
  %71 = vmatprep.subr.mxu0 0.0
  %v72 = vand.u32 %v14, 4294901760
  %73 = vmatpush1.msra.mxu0 %v72
  %74 = vmatprep.subr.mxu0 0.0
  %v75 = vand.u32 %v13, 4294901760
  %76 = vmatpush1.msra.mxu0 %v75
  %77 = vmatprep.subr.mxu0 0.0
  %78 = vmatpush2.msra.mxu0 0.0
  %79 = vmatprep.subr.mxu0 0.0
  %80 = vmatpush2.msra.mxu0 0.0
  %81 = vmatprep.subr.mxu0 0.0
  %82 = vmatpush2.msra.mxu0 0.0
  %83 = vmatprep.subr.mxu0 0.0
  %84 = vmatpush2.msra.mxu0 0.0
  %85 = vmatprep.subr.mxu0 0.0
  %86 = vmatpush2.msra.mxu0 0.0
  %87 = vmatprep.subr.mxu0 0.0
  %88 = vmatpush2.msra.mxu0 0.0
  %89 = vmatprep.subr.mxu0 0.0
  %90 = vmatpush2.msra.mxu0 0.0
  %91 = vmatprep.subr.mxu0 0.0
  %92 = vmatpush2.msra.mxu0 0.0
  %93 = vmatprep.subr.mxu0 0.0
  %94 = vmatpush2.msra.mxu0 0.0
  %95 = vmatprep.subr.mxu0 0.0
  %96 = vmatpush2.msra.mxu0 0.0
  %97 = vmatprep.subr.mxu0 0.0
  %98 = vmatpush2.msra.mxu0 0.0
  %99 = vmatprep.subr.mxu0 0.0
  %100 = vmatpush2.msra.mxu0 0.0
  %101 = vmatprep.subr.mxu0 0.0
  %102 = vmatpush2.msra.mxu0 0.0
  %103 = vmatprep.subr.mxu0 0.0
  %104 = vmatpush2.msra.mxu0 0.0
  %105 = vmatprep.subr.mxu0 0.0
  %106 = vmatpush2.msra.mxu0 0.0
  %107 = vmatprep.subr.mxu0 0.0
  %108 = vmatpush2.msra.mxu0 0.0
  %109 = vmatprep.mubr.f32.mxu0 0.0
  %v110 = vand.u32 %v12, 4294901760
  %v111 = vsub.f32 %v12, %v110
  %v112 = vand.u32 %v111, 4294901760
  %v113 = vsub.f32 %v111, %v112
  %v114 = vand.u32 %v113, 4294901760
  %115 = vmatmul.mubr.f32.gmra.mxu0 %v114
  %v116 = vpop.f32.mrf.mxu0
  %v117 = vadd.f32 0.0, %v116
  %v118 = vpop.f32.mrf.mxu0
  %119 = vdwg.mxu0
  %120 = vmatprep.subr.mxu0 0.0
  %v121 = vand.u32 %v28, 4294901760
  %v122 = vsub.f32 %v28, %v121
  %v123 = vand.u32 %v122, 4294901760
  %v124 = vsub.f32 %v122, %v123
  %v125 = vand.u32 %v124, 4294901760
  %126 = vmatpush1.msra.mxu0 %v125
  %127 = vmatprep.subr.mxu0 0.0
  %v128 = vand.u32 %v27, 4294901760
  %v129 = vsub.f32 %v27, %v128
  %v130 = vand.u32 %v129, 4294901760
  %v131 = vsub.f32 %v129, %v130
  %v132 = vand.u32 %v131, 4294901760
  %133 = vmatpush1.msra.mxu0 %v132
  %134 = vmatprep.subr.mxu0 0.0
  %v135 = vand.u32 %v26, 4294901760
  %v136 = vsub.f32 %v26, %v135
  %v137 = vand.u32 %v136, 4294901760
  %v138 = vsub.f32 %v136, %v137
  %v139 = vand.u32 %v138, 4294901760
  %140 = vmatpush1.msra.mxu0 %v139
  %141 = vmatprep.subr.mxu0 0.0
  %v142 = vand.u32 %v25, 4294901760
  %v143 = vsub.f32 %v25, %v142
  %v144 = vand.u32 %v143, 4294901760
  %v145 = vsub.f32 %v143, %v144
  %v146 = vand.u32 %v145, 4294901760
  %147 = vmatpush1.msra.mxu0 %v146
  %148 = vmatprep.subr.mxu0 0.0
  %v149 = vand.u32 %v24, 4294901760
  %v150 = vsub.f32 %v24, %v149
  %v151 = vand.u32 %v150, 4294901760
  %v152 = vsub.f32 %v150, %v151
  %v153 = vand.u32 %v152, 4294901760
  %154 = vmatpush1.msra.mxu0 %v153
  %155 = vmatprep.subr.mxu0 0.0
  %v156 = vand.u32 %v23, 4294901760
  %v157 = vsub.f32 %v23, %v156
  %v158 = vand.u32 %v157, 4294901760
  %v159 = vsub.f32 %v157, %v158
  %v160 = vand.u32 %v159, 4294901760
  %161 = vmatpush1.msra.mxu0 %v160
  %162 = vmatprep.subr.mxu0 0.0
  %v163 = vand.u32 %v22, 4294901760
  %v164 = vsub.f32 %v22, %v163
  %v165 = vand.u32 %v164, 4294901760
  %v166 = vsub.f32 %v164, %v165
  %v167 = vand.u32 %v166, 4294901760
  %168 = vmatpush1.msra.mxu0 %v167
  %169 = vmatprep.subr.mxu0 0.0
  %v170 = vand.u32 %v21, 4294901760
  %v171 = vsub.f32 %v21, %v170
  %v172 = vand.u32 %v171, 4294901760
  %v173 = vsub.f32 %v171, %v172
  %v174 = vand.u32 %v173, 4294901760
  %175 = vmatpush1.msra.mxu0 %v174
  %176 = vmatprep.subr.mxu0 0.0
  %v177 = vand.u32 %v20, 4294901760
  %v178 = vsub.f32 %v20, %v177
  %v179 = vand.u32 %v178, 4294901760
  %v180 = vsub.f32 %v178, %v179
  %v181 = vand.u32 %v180, 4294901760
  %182 = vmatpush1.msra.mxu0 %v181
  %183 = vmatprep.subr.mxu0 0.0
  %v184 = vand.u32 %v19, 4294901760
  %v185 = vsub.f32 %v19, %v184
  %v186 = vand.u32 %v185, 4294901760
  %v187 = vsub.f32 %v185, %v186
  %v188 = vand.u32 %v187, 4294901760
  %189 = vmatpush1.msra.mxu0 %v188
  %190 = vmatprep.subr.mxu0 0.0
  %v191 = vand.u32 %v18, 4294901760
  %v192 = vsub.f32 %v18, %v191
  %v193 = vand.u32 %v192, 4294901760
  %v194 = vsub.f32 %v192, %v193
  %v195 = vand.u32 %v194, 4294901760
  %196 = vmatpush1.msra.mxu0 %v195
  %197 = vmatprep.subr.mxu0 0.0
  %v198 = vand.u32 %v17, 4294901760
  %v199 = vsub.f32 %v17, %v198
  %v200 = vand.u32 %v199, 4294901760
  %v201 = vsub.f32 %v199, %v200
  %v202 = vand.u32 %v201, 4294901760
  %203 = vmatpush1.msra.mxu0 %v202
  %204 = vmatprep.subr.mxu0 0.0
  %v205 = vand.u32 %v16, 4294901760
  %v206 = vsub.f32 %v16, %v205
  %v207 = vand.u32 %v206, 4294901760
  %v208 = vsub.f32 %v206, %v207
  %v209 = vand.u32 %v208, 4294901760
  %210 = vmatpush1.msra.mxu0 %v209
  %211 = vmatprep.subr.mxu0 0.0
  %v212 = vand.u32 %v15, 4294901760
  %v213 = vsub.f32 %v15, %v212
  %v214 = vand.u32 %v213, 4294901760
  %v215 = vsub.f32 %v213, %v214
  %v216 = vand.u32 %v215, 4294901760
  %217 = vmatpush1.msra.mxu0 %v216
  %218 = vmatprep.subr.mxu0 0.0
  %v219 = vand.u32 %v14, 4294901760
  %v220 = vsub.f32 %v14, %v219
  %v221 = vand.u32 %v220, 4294901760
  %v222 = vsub.f32 %v220, %v221
  %v223 = vand.u32 %v222, 4294901760
  %224 = vmatpush1.msra.mxu0 %v223
  %225 = vmatprep.subr.mxu0 0.0
  %v226 = vand.u32 %v13, 4294901760
  %v227 = vsub.f32 %v13, %v226
  %v228 = vand.u32 %v227, 4294901760
  %v229 = vsub.f32 %v227, %v228
  %v230 = vand.u32 %v229, 4294901760
  %231 = vmatpush1.msra.mxu0 %v230
  %232 = vmatprep.subr.mxu0 0.0
  %233 = vmatpush2.msra.mxu0 0.0
  %234 = vmatprep.subr.mxu0 0.0
  %235 = vmatpush2.msra.mxu0 0.0
  %236 = vmatprep.subr.mxu0 0.0
  %237 = vmatpush2.msra.mxu0 0.0
  %238 = vmatprep.subr.mxu0 0.0
  %239 = vmatpush2.msra.mxu0 0.0
  %240 = vmatprep.subr.mxu0 0.0
  %241 = vmatpush2.msra.mxu0 0.0
  %242 = vmatprep.subr.mxu0 0.0
  %243 = vmatpush2.msra.mxu0 0.0
  %244 = vmatprep.subr.mxu0 0.0
  %245 = vmatpush2.msra.mxu0 0.0
  %246 = vmatprep.subr.mxu0 0.0
  %247 = vmatpush2.msra.mxu0 0.0
  %248 = vmatprep.subr.mxu0 0.0
  %249 = vmatpush2.msra.mxu0 0.0
  %250 = vmatprep.subr.mxu0 0.0
  %251 = vmatpush2.msra.mxu0 0.0
  %252 = vmatprep.subr.mxu0 0.0
  %253 = vmatpush2.msra.mxu0 0.0
  %254 = vmatprep.subr.mxu0 0.0
  %255 = vmatpush2.msra.mxu0 0.0
  %256 = vmatprep.subr.mxu0 0.0
  %257 = vmatpush2.msra.mxu0 0.0
  %258 = vmatprep.subr.mxu0 0.0
  %259 = vmatpush2.msra.mxu0 0.0
  %260 = vmatprep.subr.mxu0 0.0
  %261 = vmatpush2.msra.mxu0 0.0
  %262 = vmatprep.subr.mxu0 0.0
  %263 = vmatpush2.msra.mxu0 0.0
  %264 = vmatprep.mubr.f32.mxu0 0.0
  %v265 = vand.u32 %v12, 4294901760
  %266 = vmatmul.mubr.f32.gmra.mxu0 %v265
  %v267 = vpop.f32.mrf.mxu0
  %v268 = vadd.f32 %v117, %v267
  %v269 = vpop.f32.mrf.mxu0
  %270 = vdwg.mxu0
  %271 = vmatprep.subr.mxu0 0.0
  %v272 = vand.u32 %v28, 4294901760
  %v273 = vsub.f32 %v28, %v272
  %274 = vmatpush1.msra.mxu0 %v273
  %275 = vmatprep.subr.mxu0 0.0
  %v276 = vand.u32 %v27, 4294901760
  %v277 = vsub.f32 %v27, %v276
  %278 = vmatpush1.msra.mxu0 %v277
  %279 = vmatprep.subr.mxu0 0.0
  %v280 = vand.u32 %v26, 4294901760
  %v281 = vsub.f32 %v26, %v280
  %282 = vmatpush1.msra.mxu0 %v281
  %283 = vmatprep.subr.mxu0 0.0
  %v284 = vand.u32 %v25, 4294901760
  %v285 = vsub.f32 %v25, %v284
  %286 = vmatpush1.msra.mxu0 %v285
  %287 = vmatprep.subr.mxu0 0.0
  %v288 = vand.u32 %v24, 4294901760
  %v289 = vsub.f32 %v24, %v288
  %290 = vmatpush1.msra.mxu0 %v289
  %291 = vmatprep.subr.mxu0 0.0
  %v292 = vand.u32 %v23, 4294901760
  %v293 = vsub.f32 %v23, %v292
  %294 = vmatpush1.msra.mxu0 %v293
  %295 = vmatprep.subr.mxu0 0.0
  %v296 = vand.u32 %v22, 4294901760
  %v297 = vsub.f32 %v22, %v296
  %298 = vmatpush1.msra.mxu0 %v297
  %299 = vmatprep.subr.mxu0 0.0
  %v300 = vand.u32 %v21, 4294901760
  %v301 = vsub.f32 %v21, %v300
  %302 = vmatpush1.msra.mxu0 %v301
  %303 = vmatprep.subr.mxu0 0.0
  %v304 = vand.u32 %v20, 4294901760
  %v305 = vsub.f32 %v20, %v304
  %306 = vmatpush1.msra.mxu0 %v305
  %307 = vmatprep.subr.mxu0 0.0
  %v308 = vand.u32 %v19, 4294901760
  %v309 = vsub.f32 %v19, %v308
  %310 = vmatpush1.msra.mxu0 %v309
  %311 = vmatprep.subr.mxu0 0.0
  %v312 = vand.u32 %v18, 4294901760
  %v313 = vsub.f32 %v18, %v312
  %314 = vmatpush1.msra.mxu0 %v313
  %315 = vmatprep.subr.mxu0 0.0
  %v316 = vand.u32 %v17, 4294901760
  %v317 = vsub.f32 %v17, %v316
  %318 = vmatpush1.msra.mxu0 %v317
  %319 = vmatprep.subr.mxu0 0.0
  %v320 = vand.u32 %v16, 4294901760
  %v321 = vsub.f32 %v16, %v320
  %322 = vmatpush1.msra.mxu0 %v321
  %323 = vmatprep.subr.mxu0 0.0
  %v324 = vand.u32 %v15, 4294901760
  %v325 = vsub.f32 %v15, %v324
  %326 = vmatpush1.msra.mxu0 %v325
  %327 = vmatprep.subr.mxu0 0.0
  %v328 = vand.u32 %v14, 4294901760
  %v329 = vsub.f32 %v14, %v328
  %330 = vmatpush1.msra.mxu0 %v329
  %331 = vmatprep.subr.mxu0 0.0
  %v332 = vand.u32 %v13, 4294901760
  %v333 = vsub.f32 %v13, %v332
  %334 = vmatpush1.msra.mxu0 %v333
  %335 = vmatprep.subr.mxu0 0.0
  %336 = vmatpush2.msra.mxu0 0.0
  %337 = vmatprep.subr.mxu0 0.0
  %338 = vmatpush2.msra.mxu0 0.0
  %339 = vmatprep.subr.mxu0 0.0
  %340 = vmatpush2.msra.mxu0 0.0
  %341 = vmatprep.subr.mxu0 0.0
  %342 = vmatpush2.msra.mxu0 0.0
  %343 = vmatprep.subr.mxu0 0.0
  %344 = vmatpush2.msra.mxu0 0.0
  %345 = vmatprep.subr.mxu0 0.0
  %346 = vmatpush2.msra.mxu0 0.0
  %347 = vmatprep.subr.mxu0 0.0
  %348 = vmatpush2.msra.mxu0 0.0
  %349 = vmatprep.subr.mxu0 0.0
  %350 = vmatpush2.msra.mxu0 0.0
  %351 = vmatprep.subr.mxu0 0.0
  %352 = vmatpush2.msra.mxu0 0.0
  %353 = vmatprep.subr.mxu0 0.0
  %354 = vmatpush2.msra.mxu0 0.0
  %355 = vmatprep.subr.mxu0 0.0
  %356 = vmatpush2.msra.mxu0 0.0
  %357 = vmatprep.subr.mxu0 0.0
  %358 = vmatpush2.msra.mxu0 0.0
  %359 = vmatprep.subr.mxu0 0.0
  %360 = vmatpush2.msra.mxu0 0.0
  %361 = vmatprep.subr.mxu0 0.0
  %362 = vmatpush2.msra.mxu0 0.0
  %363 = vmatprep.subr.mxu0 0.0
  %364 = vmatpush2.msra.mxu0 0.0
  %365 = vmatprep.subr.mxu0 0.0
  %366 = vmatpush2.msra.mxu0 0.0
  %367 = vmatprep.mubr.f32.mxu0 0.0
  %v368 = vand.u32 %v12, 4294901760
  %v369 = vsub.f32 %v12, %v368
  %370 = vmatmul.mubr.f32.gmra.mxu0 %v369
  %v371 = vpop.f32.mrf.mxu0
  %v372 = vadd.f32 %v268, %v371
  %v373 = vpop.f32.mrf.mxu0
  %374 = vdwg.mxu0
  %375 = vmatprep.subr.mxu0 0.0
  %v376 = vand.u32 %v28, 4294901760
  %377 = vmatpush1.msra.mxu0 %v376
  %378 = vmatprep.subr.mxu0 0.0
  %v379 = vand.u32 %v27, 4294901760
  %380 = vmatpush1.msra.mxu0 %v379
  %381 = vmatprep.subr.mxu0 0.0
  %v382 = vand.u32 %v26, 4294901760
  %383 = vmatpush1.msra.mxu0 %v382
  %384 = vmatprep.subr.mxu0 0.0
  %v385 = vand.u32 %v25, 4294901760
  %386 = vmatpush1.msra.mxu0 %v385
  %387 = vmatprep.subr.mxu0 0.0
  %v388 = vand.u32 %v24, 4294901760
  %389 = vmatpush1.msra.mxu0 %v388
  %390 = vmatprep.subr.mxu0 0.0
  %v391 = vand.u32 %v23, 4294901760
  %392 = vmatpush1.msra.mxu0 %v391
  %393 = vmatprep.subr.mxu0 0.0
  %v394 = vand.u32 %v22, 4294901760
  %395 = vmatpush1.msra.mxu0 %v394
  %396 = vmatprep.subr.mxu0 0.0
  %v397 = vand.u32 %v21, 4294901760
  %398 = vmatpush1.msra.mxu0 %v397
  %399 = vmatprep.subr.mxu0 0.0
  %v400 = vand.u32 %v20, 4294901760
  %401 = vmatpush1.msra.mxu0 %v400
  %402 = vmatprep.subr.mxu0 0.0
  %v403 = vand.u32 %v19, 4294901760
  %404 = vmatpush1.msra.mxu0 %v403
  %405 = vmatprep.subr.mxu0 0.0
  %v406 = vand.u32 %v18, 4294901760
  %407 = vmatpush1.msra.mxu0 %v406
  %408 = vmatprep.subr.mxu0 0.0
  %v409 = vand.u32 %v17, 4294901760
  %410 = vmatpush1.msra.mxu0 %v409
  %411 = vmatprep.subr.mxu0 0.0
  %v412 = vand.u32 %v16, 4294901760
  %413 = vmatpush1.msra.mxu0 %v412
  %414 = vmatprep.subr.mxu0 0.0
  %v415 = vand.u32 %v15, 4294901760
  %416 = vmatpush1.msra.mxu0 %v415
  %417 = vmatprep.subr.mxu0 0.0
  %v418 = vand.u32 %v14, 4294901760
  %419 = vmatpush1.msra.mxu0 %v418
  %420 = vmatprep.subr.mxu0 0.0
  %v421 = vand.u32 %v13, 4294901760
  %422 = vmatpush1.msra.mxu0 %v421
  %423 = vmatprep.subr.mxu0 0.0
  %424 = vmatpush2.msra.mxu0 0.0
  %425 = vmatprep.subr.mxu0 0.0
  %426 = vmatpush2.msra.mxu0 0.0
  %427 = vmatprep.subr.mxu0 0.0
  %428 = vmatpush2.msra.mxu0 0.0
  %429 = vmatprep.subr.mxu0 0.0
  %430 = vmatpush2.msra.mxu0 0.0
  %431 = vmatprep.subr.mxu0 0.0
  %432 = vmatpush2.msra.mxu0 0.0
  %433 = vmatprep.subr.mxu0 0.0
  %434 = vmatpush2.msra.mxu0 0.0
  %435 = vmatprep.subr.mxu0 0.0
  %436 = vmatpush2.msra.mxu0 0.0
  %437 = vmatprep.subr.mxu0 0.0
  %438 = vmatpush2.msra.mxu0 0.0
  %439 = vmatprep.subr.mxu0 0.0
  %440 = vmatpush2.msra.mxu0 0.0
  %441 = vmatprep.subr.mxu0 0.0
  %442 = vmatpush2.msra.mxu0 0.0
  %443 = vmatprep.subr.mxu0 0.0
  %444 = vmatpush2.msra.mxu0 0.0
  %445 = vmatprep.subr.mxu0 0.0
  %446 = vmatpush2.msra.mxu0 0.0
  %447 = vmatprep.subr.mxu0 0.0
  %448 = vmatpush2.msra.mxu0 0.0
  %449 = vmatprep.subr.mxu0 0.0
  %450 = vmatpush2.msra.mxu0 0.0
  %451 = vmatprep.subr.mxu0 0.0
  %452 = vmatpush2.msra.mxu0 0.0
  %453 = vmatprep.subr.mxu0 0.0
  %454 = vmatpush2.msra.mxu0 0.0
  %455 = vmatprep.mubr.f32.mxu0 0.0
  %v456 = vand.u32 %v12, 4294901760
  %v457 = vsub.f32 %v12, %v456
  %v458 = vand.u32 %v457, 4294901760
  %459 = vmatmul.mubr.f32.gmra.mxu0 %v458
  %v460 = vpop.f32.mrf.mxu0
  %v461 = vadd.f32 %v372, %v460
  %v462 = vpop.f32.mrf.mxu0
  %463 = vdwg.mxu0
  %464 = vmatprep.subr.mxu0 0.0
  %v465 = vand.u32 %v28, 4294901760
  %v466 = vsub.f32 %v28, %v465
  %v467 = vand.u32 %v466, 4294901760
  %468 = vmatpush1.msra.mxu0 %v467
  %469 = vmatprep.subr.mxu0 0.0
  %v470 = vand.u32 %v27, 4294901760
  %v471 = vsub.f32 %v27, %v470
  %v472 = vand.u32 %v471, 4294901760
  %473 = vmatpush1.msra.mxu0 %v472
  %474 = vmatprep.subr.mxu0 0.0
  %v475 = vand.u32 %v26, 4294901760
  %v476 = vsub.f32 %v26, %v475
  %v477 = vand.u32 %v476, 4294901760
  %478 = vmatpush1.msra.mxu0 %v477
  %479 = vmatprep.subr.mxu0 0.0
  %v480 = vand.u32 %v25, 4294901760
  %v481 = vsub.f32 %v25, %v480
  %v482 = vand.u32 %v481, 4294901760
  %483 = vmatpush1.msra.mxu0 %v482
  %484 = vmatprep.subr.mxu0 0.0
  %v485 = vand.u32 %v24, 4294901760
  %v486 = vsub.f32 %v24, %v485
  %v487 = vand.u32 %v486, 4294901760
  %488 = vmatpush1.msra.mxu0 %v487
  %489 = vmatprep.subr.mxu0 0.0
  %v490 = vand.u32 %v23, 4294901760
  %v491 = vsub.f32 %v23, %v490
  %v492 = vand.u32 %v491, 4294901760
  %493 = vmatpush1.msra.mxu0 %v492
  %494 = vmatprep.subr.mxu0 0.0
  %v495 = vand.u32 %v22, 4294901760
  %v496 = vsub.f32 %v22, %v495
  %v497 = vand.u32 %v496, 4294901760
  %498 = vmatpush1.msra.mxu0 %v497
  %499 = vmatprep.subr.mxu0 0.0
  %v500 = vand.u32 %v21, 4294901760
  %v501 = vsub.f32 %v21, %v500
  %v502 = vand.u32 %v501, 4294901760
  %503 = vmatpush1.msra.mxu0 %v502
  %504 = vmatprep.subr.mxu0 0.0
  %v505 = vand.u32 %v20, 4294901760
  %v506 = vsub.f32 %v20, %v505
  %v507 = vand.u32 %v506, 4294901760
  %508 = vmatpush1.msra.mxu0 %v507
  %509 = vmatprep.subr.mxu0 0.0
  %v510 = vand.u32 %v19, 4294901760
  %v511 = vsub.f32 %v19, %v510
  %v512 = vand.u32 %v511, 4294901760
  %513 = vmatpush1.msra.mxu0 %v512
  %514 = vmatprep.subr.mxu0 0.0
  %v515 = vand.u32 %v18, 4294901760
  %v516 = vsub.f32 %v18, %v515
  %v517 = vand.u32 %v516, 4294901760
  %518 = vmatpush1.msra.mxu0 %v517
  %519 = vmatprep.subr.mxu0 0.0
  %v520 = vand.u32 %v17, 4294901760
  %v521 = vsub.f32 %v17, %v520
  %v522 = vand.u32 %v521, 4294901760
  %523 = vmatpush1.msra.mxu0 %v522
  %524 = vmatprep.subr.mxu0 0.0
  %v525 = vand.u32 %v16, 4294901760
  %v526 = vsub.f32 %v16, %v525
  %v527 = vand.u32 %v526, 4294901760
  %528 = vmatpush1.msra.mxu0 %v527
  %529 = vmatprep.subr.mxu0 0.0
  %v530 = vand.u32 %v15, 4294901760
  %v531 = vsub.f32 %v15, %v530
  %v532 = vand.u32 %v531, 4294901760
  %533 = vmatpush1.msra.mxu0 %v532
  %534 = vmatprep.subr.mxu0 0.0
  %v535 = vand.u32 %v14, 4294901760
  %v536 = vsub.f32 %v14, %v535
  %v537 = vand.u32 %v536, 4294901760
  %538 = vmatpush1.msra.mxu0 %v537
  %539 = vmatprep.subr.mxu0 0.0
  %v540 = vand.u32 %v13, 4294901760
  %v541 = vsub.f32 %v13, %v540
  %v542 = vand.u32 %v541, 4294901760
  %543 = vmatpush1.msra.mxu0 %v542
  %544 = vmatprep.subr.mxu0 0.0
  %545 = vmatpush2.msra.mxu0 0.0
  %546 = vmatprep.subr.mxu0 0.0
  %547 = vmatpush2.msra.mxu0 0.0
  %548 = vmatprep.subr.mxu0 0.0
  %549 = vmatpush2.msra.mxu0 0.0
  %550 = vmatprep.subr.mxu0 0.0
  %551 = vmatpush2.msra.mxu0 0.0
  %552 = vmatprep.subr.mxu0 0.0
  %553 = vmatpush2.msra.mxu0 0.0
  %554 = vmatprep.subr.mxu0 0.0
  %555 = vmatpush2.msra.mxu0 0.0
  %556 = vmatprep.subr.mxu0 0.0
  %557 = vmatpush2.msra.mxu0 0.0
  %558 = vmatprep.subr.mxu0 0.0
  %559 = vmatpush2.msra.mxu0 0.0
  %560 = vmatprep.subr.mxu0 0.0
  %561 = vmatpush2.msra.mxu0 0.0
  %562 = vmatprep.subr.mxu0 0.0
  %563 = vmatpush2.msra.mxu0 0.0
  %564 = vmatprep.subr.mxu0 0.0
  %565 = vmatpush2.msra.mxu0 0.0
  %566 = vmatprep.subr.mxu0 0.0
  %567 = vmatpush2.msra.mxu0 0.0
  %568 = vmatprep.subr.mxu0 0.0
  %569 = vmatpush2.msra.mxu0 0.0
  %570 = vmatprep.subr.mxu0 0.0
  %571 = vmatpush2.msra.mxu0 0.0
  %572 = vmatprep.subr.mxu0 0.0
  %573 = vmatpush2.msra.mxu0 0.0
  %574 = vmatprep.subr.mxu0 0.0
  %575 = vmatpush2.msra.mxu0 0.0
  %576 = vmatprep.mubr.f32.mxu0 0.0
  %v577 = vand.u32 %v12, 4294901760
  %578 = vmatmul.mubr.f32.gmra.mxu0 %v577
  %v579 = vpop.f32.mrf.mxu0
  %v580 = vadd.f32 %v461, %v579
  %v581 = vpop.f32.mrf.mxu0
  %582 = vdwg.mxu0
  %583 = vmatprep.subr.mxu0 0.0
  %v584 = vand.u32 %v28, 4294901760
  %585 = vmatpush1.msra.mxu0 %v584
  %586 = vmatprep.subr.mxu0 0.0
  %v587 = vand.u32 %v27, 4294901760
  %588 = vmatpush1.msra.mxu0 %v587
  %589 = vmatprep.subr.mxu0 0.0
  %v590 = vand.u32 %v26, 4294901760
  %591 = vmatpush1.msra.mxu0 %v590
  %592 = vmatprep.subr.mxu0 0.0
  %v593 = vand.u32 %v25, 4294901760
  %594 = vmatpush1.msra.mxu0 %v593
  %595 = vmatprep.subr.mxu0 0.0
  %v596 = vand.u32 %v24, 4294901760
  %597 = vmatpush1.msra.mxu0 %v596
  %598 = vmatprep.subr.mxu0 0.0
  %v599 = vand.u32 %v23, 4294901760
  %600 = vmatpush1.msra.mxu0 %v599
  %601 = vmatprep.subr.mxu0 0.0
  %v602 = vand.u32 %v22, 4294901760
  %603 = vmatpush1.msra.mxu0 %v602
  %604 = vmatprep.subr.mxu0 0.0
  %v605 = vand.u32 %v21, 4294901760
  %606 = vmatpush1.msra.mxu0 %v605
  %607 = vmatprep.subr.mxu0 0.0
  %v608 = vand.u32 %v20, 4294901760
  %609 = vmatpush1.msra.mxu0 %v608
  %610 = vmatprep.subr.mxu0 0.0
  %v611 = vand.u32 %v19, 4294901760
  %612 = vmatpush1.msra.mxu0 %v611
  %613 = vmatprep.subr.mxu0 0.0
  %v614 = vand.u32 %v18, 4294901760
  %615 = vmatpush1.msra.mxu0 %v614
  %616 = vmatprep.subr.mxu0 0.0
  %v617 = vand.u32 %v17, 4294901760
  %618 = vmatpush1.msra.mxu0 %v617
  %619 = vmatprep.subr.mxu0 0.0
  %v620 = vand.u32 %v16, 4294901760
  %621 = vmatpush1.msra.mxu0 %v620
  %622 = vmatprep.subr.mxu0 0.0
  %v623 = vand.u32 %v15, 4294901760
  %624 = vmatpush1.msra.mxu0 %v623
  %625 = vmatprep.subr.mxu0 0.0
  %v626 = vand.u32 %v14, 4294901760
  %627 = vmatpush1.msra.mxu0 %v626
  %628 = vmatprep.subr.mxu0 0.0
  %v629 = vand.u32 %v13, 4294901760
  %630 = vmatpush1.msra.mxu0 %v629
  %631 = vmatprep.subr.mxu0 0.0
  %632 = vmatpush2.msra.mxu0 0.0
  %633 = vmatprep.subr.mxu0 0.0
  %634 = vmatpush2.msra.mxu0 0.0
  %635 = vmatprep.subr.mxu0 0.0
  %636 = vmatpush2.msra.mxu0 0.0
  %637 = vmatprep.subr.mxu0 0.0
  %638 = vmatpush2.msra.mxu0 0.0
  %639 = vmatprep.subr.mxu0 0.0
  %640 = vmatpush2.msra.mxu0 0.0
  %641 = vmatprep.subr.mxu0 0.0
  %642 = vmatpush2.msra.mxu0 0.0
  %643 = vmatprep.subr.mxu0 0.0
  %644 = vmatpush2.msra.mxu0 0.0
  %645 = vmatprep.subr.mxu0 0.0
  %646 = vmatpush2.msra.mxu0 0.0
  %647 = vmatprep.subr.mxu0 0.0
  %648 = vmatpush2.msra.mxu0 0.0
  %649 = vmatprep.subr.mxu0 0.0
  %650 = vmatpush2.msra.mxu0 0.0
  %651 = vmatprep.subr.mxu0 0.0
  %652 = vmatpush2.msra.mxu0 0.0
  %653 = vmatprep.subr.mxu0 0.0
  %654 = vmatpush2.msra.mxu0 0.0
  %655 = vmatprep.subr.mxu0 0.0
  %656 = vmatpush2.msra.mxu0 0.0
  %657 = vmatprep.subr.mxu0 0.0
  %658 = vmatpush2.msra.mxu0 0.0
  %659 = vmatprep.subr.mxu0 0.0
  %660 = vmatpush2.msra.mxu0 0.0
  %661 = vmatprep.subr.mxu0 0.0
  %662 = vmatpush2.msra.mxu0 0.0
  %663 = vmatprep.mubr.f32.mxu0 0.0
  %v664 = vand.u32 %v12, 4294901760
  %665 = vmatmul.mubr.f32.gmra.mxu0 %v664
  %v666 = vpop.f32.mrf.mxu0
  %v667 = vadd.f32 %v580, %v666
  %v668 = vpop.f32.mrf.mxu0
  %669 = vdwg.mxu0
  %v670 = vadd.f32 %v667, 1e-08
  %v671 = vrsqrt.pop %v670
  %v672 = vmul.f32 %v667, %v671
  %v673 = vadd.f32 %v667, 1.0
  %v674 = vrcp.pop %v673
  %v675 = vmul.f32 %v672, %v674
  %v676 = vmul.f32 %v11, %v675
  %677 = vst [vmem:[%s2] sm:$0xff] %v676
  // Predicated region
  $region10: #{squash.1} parent=0 // pred_check
    _
  $region11: #{squash.1} parent=0 // pred_check_branch
    %679 = sbr.rel (0) target = $region13
  $region12: #{squash.1} parent=0 // pred_region
    _
  $region13: #{squash.1} parent=0 // pred_fallthru
    _
  // Predicated region
  $region14: #{squash.1} parent=0 // pred_check
    _
  $region15: #{squash.1} parent=0 // pred_check_branch
    %681 = sbr.rel (0) target = $region17
  $region16: #{squash.1} parent=0 // pred_region
    _
  $region17: #{squash.1} parent=0 // pred_fallthru
    _

</llo_original>
